<compile_context>
chip_gen: v7x
topology: tpu7x:2x2x1
jax: 0.10.0
libtpu: 0.0.40
codegen_flags: <defaults>
</compile_context>

<pallas_src>
import jax
import jax.numpy as jnp
from jax import lax
from jax.experimental import pallas as pl
from jax.experimental.pallas import tpu as pltpu

LANE = 128


def _silu(x):
    return x * jax.nn.sigmoid(x)


def _round_up(v, m):
    return (v + m - 1) // m * m


def _pad2(a, rows, cols):
    r, c = a.shape
    return jnp.pad(a, ((0, rows - r), (0, cols - c)))


def _vmem_limit_bytes():
    """Generation-aware scoped-VMEM budget: ~75% of physical VMEM, capped at
    100 MiB (v5e/v6e: 128 MiB physical; v7x: 64 MiB -> 48 MiB)."""
    try:
        cap = int(pltpu.get_tpu_info().vmem_capacity_bytes)
        return int(min(cap * 3 // 4, 100 * 1024 * 1024))
    except Exception:
        return 48 * 1024 * 1024          # safe on every generation


# ---------------------------------------------------------------------------
# Edge kernel: message MLP layer 2 + soft-edge gate + vectorized scatter-sum.
# ---------------------------------------------------------------------------
def egc_edge_kernel(h1_ref, dst_ref, w2_ref, ec_ref, msum_ref):
    t = pl.program_id(0)

    @pl.when(t == 0)
    def _init():
        msum_ref[...] = jnp.zeros_like(msum_ref)

    b2 = ec_ref[0:1, :]            # [1,Hp]
    we = ec_ref[1:2, :]            # [1,Hp]  soft-edge weight row
    be = ec_ref[2:3, 0:1]          # [1,1]   soft-edge bias

    # message MLP (layer-1 pre-activation streamed in as bf16)
    h = _silu(h1_ref[...].astype(jnp.float32))                       # [TE,Hp]
    msg = jnp.dot(h.astype(jnp.bfloat16), w2_ref[...],
                  preferred_element_type=jnp.float32) + b2           # bf16 MXU
    msg = _silu(msg)
    # soft-edge gate: VPU multiply + lane reduction
    gate = jax.nn.sigmoid(jnp.sum(msg * we, axis=-1, keepdims=True) + be)
    m = (msg * gate).astype(jnp.bfloat16)                            # [TE,Hp]

    # Vectorized scatter-add (replaces the former per-edge serial RMW loop):
    # one-hot(dst) [TE,N_pad] contracted over the edge axis on the MXU.
    te = h1_ref.shape[0]
    n_pad = msum_ref.shape[0]
    onehot = (dst_ref[...] ==
              lax.broadcasted_iota(jnp.int32, (te, n_pad), 1)
              ).astype(jnp.bfloat16)                                  # [TE,N_pad]
    msum_ref[...] += lax.dot_general(
        onehot, m, (((0,), (0,)), ((), ())),
        preferred_element_type=jnp.float32)                           # [N_pad,Hp]


# ---------------------------------------------------------------------------
# Node kernel: update MLP + residual, tiled (parallel) over node tiles.
# ---------------------------------------------------------------------------
def egc_node_kernel(msum_ref, feat_ref, u1_ref, u2_ref, nc_ref, out_ref):
    c1 = nc_ref[0:1, :]
    c2 = nc_ref[1:2, :]
    feat = feat_ref[...]
    inp = msum_ref[...] + feat
    u = _silu(jnp.dot(inp.astype(jnp.bfloat16), u1_ref[...],
                      preferred_element_type=jnp.float32) + c1)
    h_new = jnp.dot(u.astype(jnp.bfloat16), u2_ref[...],
                    preferred_element_type=jnp.float32) + c2
    out_ref[...] = (h_new + feat).astype(out_ref.dtype)


# ---------------------------------------------------------------------------
# Wrapper
# ---------------------------------------------------------------------------
def egc_layer_forward(x, feat, src, dst, params, *, edge_tile=2048, node_tile=128):
    N, H = feat.shape
    E = src.shape[0]
    Hp = _round_up(H, LANE)                                 # lane-dense feature dim

    # node-level hoist of message-MLP layer 1 (E/N fewer MACs than per-edge)
    A = feat @ params["W1a"]
    B = feat @ params["W1b"] + params["b1"]
    sqdist = jnp.sum((x[src] - x[dst]) ** 2, axis=-1, keepdims=True)
    h1 = A[src] + B[dst] + sqdist * params["W1c"]           # [E,H] pre-activation

    # padding: H -> Hp, N -> node-tile multiple
    n_pad8 = _round_up(max(N, 1), 8)
    tn = n_pad8 if n_pad8 <= node_tile else node_tile
    n_pad = _round_up(max(N, 1), tn)
    feat_p = _pad2(feat.astype(jnp.float32), n_pad, Hp)

    w2_p = _pad2(params["W2"], Hp, Hp).astype(jnp.bfloat16)
    u1_p = _pad2(params["U1"], Hp, Hp).astype(jnp.bfloat16)
    u2_p = _pad2(params["U2"], Hp, Hp).astype(jnp.bfloat16)

    ec = jnp.zeros((8, Hp), jnp.float32)                    # packed edge consts
    ec = ec.at[0, :H].set(params["b2"][0])
    ec = ec.at[1, :H].set(params["We"][:, 0])
    ec = ec.at[2, 0].set(params["be"][0, 0])
    nc = jnp.zeros((8, Hp), jnp.float32)                    # packed node consts
    nc = nc.at[0, :H].set(params["c1"][0])
    nc = nc.at[1, :H].set(params["c2"][0])

    vmem_limit = _vmem_limit_bytes()

    # ---------------- edge phase -------------------------------------------
    if E == 0:
        msum = jnp.zeros((n_pad, Hp), jnp.float32)
    else:
        te = min(edge_tile, _round_up(E, 8))
        e_pad = _round_up(E, te)
        n_tiles = e_pad // te
        h1_p = _pad2(h1, e_pad, Hp).astype(jnp.bfloat16)    # bf16 HBM stream
        # padded edges carry dst = -1 -> match no accumulator row
        dst_p = jnp.full((e_pad, 1), -1, jnp.int32).at[:E, 0].set(dst.astype(jnp.int32))

        edge_cost = pl.CostEstimate(
            flops=2 * e_pad * Hp * Hp + 2 * e_pad * n_pad * Hp + 10 * e_pad * Hp,
            transcendentals=2 * e_pad * Hp + e_pad,
            bytes_accessed=2 * e_pad * Hp + 4 * e_pad + 2 * Hp * Hp
                           + 4 * 8 * Hp + 4 * n_pad * Hp,
        )
        msum = pl.pallas_call(
            egc_edge_kernel,
            out_shape=jax.ShapeDtypeStruct((n_pad, Hp), jnp.float32),
            grid=(n_tiles,),
            in_specs=[
                pl.BlockSpec((te, Hp), lambda i: (i, 0)),   # h1 edge stream (bf16)
                pl.BlockSpec((te, 1), lambda i: (i, 0)),    # dst edge stream (int32)
                pl.BlockSpec((Hp, Hp), lambda i: (0, 0)),   # W2 (bf16, resident)
                pl.BlockSpec((8, Hp), lambda i: (0, 0)),    # packed b2 / We / be
            ],
            out_specs=pl.BlockSpec((n_pad, Hp), lambda i: (0, 0)),  # resident acc
            compiler_params=pltpu.CompilerParams(
                dimension_semantics=("arbitrary",),         # accumulation axis
                vmem_limit_bytes=vmem_limit,
            ),
            cost_estimate=edge_cost,
        )(h1_p, dst_p, w2_p, ec)

    # ---------------- node phase -------------------------------------------
    node_cost = pl.CostEstimate(
        flops=4 * n_pad * Hp * Hp + 4 * n_pad * Hp,
        transcendentals=n_pad * Hp,
        bytes_accessed=8 * n_pad * Hp + 4 * Hp * Hp + 4 * n_pad * Hp + 4 * 8 * Hp,
    )
    out = pl.pallas_call(
        egc_node_kernel,
        out_shape=jax.ShapeDtypeStruct((n_pad, Hp), jnp.float32),
        grid=(n_pad // tn,),
        in_specs=[
            pl.BlockSpec((tn, Hp), lambda i: (i, 0)),       # m_sum node tile
            pl.BlockSpec((tn, Hp), lambda i: (i, 0)),       # feat node tile
            pl.BlockSpec((Hp, Hp), lambda i: (0, 0)),       # U1 (bf16)
            pl.BlockSpec((Hp, Hp), lambda i: (0, 0)),       # U2 (bf16)
            pl.BlockSpec((8, Hp), lambda i: (0, 0)),        # packed c1 / c2
        ],
        out_specs=pl.BlockSpec((tn, Hp), lambda i: (i, 0)),
        compiler_params=pltpu.CompilerParams(
            dimension_semantics=("parallel",),              # node tiles independent
            vmem_limit_bytes=vmem_limit,
        ),
        cost_estimate=node_cost,
    )(msum, feat_p, u1_p, u2_p, nc)

    return out[:N, :H]


# ---------------------------------------------------------------------------
# Pure-JAX reference (f32) matching the PyTorch module semantics.
# ---------------------------------------------------------------------------
def egc_layer_reference(x, feat, src, dst, params):
    x_src, x_dst = x[src], x[dst]
    f_src, f_dst = feat[src], feat[dst]
    sqdist = jnp.sum((x_src - x_dst) ** 2, axis=-1, keepdims=True)
    msg_in = jnp.concatenate([f_src, f_dst, sqdist], axis=-1)
    W1 = jnp.concatenate([params["W1a"], params["W1b"], params["W1c"]], axis=0)
    h = _silu(msg_in @ W1 + params["b1"])
    msg = _silu(h @ params["W2"] + params["b2"])
    ew = jax.nn.sigmoid(msg @ params["We"] + params["be"])
    m = msg * ew
    m_sum = jax.ops.segment_sum(m, dst, num_segments=feat.shape[0])
    inp = m_sum + feat
    u = _silu(inp @ params["U1"] + params["c1"])
    h_new = u @ params["U2"] + params["c2"]
    return h_new + feat


def init_params(key, hidden_dim):
    H = hidden_dim
    ks = jax.random.split(key, 8)
    s = 0.1
    return {
        # message MLP layer 1: in_dim = 2H + 1 (feat_src / feat_dst / sqdist rows)
        "W1a": s * jax.random.normal(ks[0], (H, H), jnp.float32),
        "W1b": s * jax.random.normal(ks[1], (H, H), jnp.float32),
        "W1c": s * jax.random.normal(ks[2], (1, H), jnp.float32),
        "b1": jnp.zeros((1, H), jnp.float32),
        # message MLP layer 2
        "W2": s * jax.random.normal(ks[3], (H, H), jnp.float32),
        "b2": jnp.zeros((1, H), jnp.float32),
        # soft edge network (H -> 1)
        "We": s * jax.random.normal(ks[4], (H, 1), jnp.float32),
        "be": jnp.zeros((1, 1), jnp.float32),
        # update MLP layer 1 / 2
        "U1": s * jax.random.normal(ks[5], (H, H), jnp.float32),
        "c1": jnp.zeros((1, H), jnp.float32),
        "U2": s * jax.random.normal(ks[6], (H, H), jnp.float32),
        "c2": jnp.zeros((1, H), jnp.float32),
    }


if __name__ == "__main__":
    N = 8          # nodes
    H = 32         # hidden_dim
    key = jax.random.PRNGKey(0)
    k_x, k_f, k_p = jax.random.split(key, 3)

    x = jax.random.normal(k_x, (N, 3), jnp.float32)        # node coordinates
    feat = jax.random.normal(k_f, (N, H), jnp.float32)     # node features
    params = init_params(k_p, H)

    # fully-connected graph without self loops: E = N*(N-1) edges
    ii, jj = jnp.meshgrid(jnp.arange(N), jnp.arange(N), indexing="ij")
    mask = ii != jj
    src = ii[mask].astype(jnp.int32)   # [E]
    dst = jj[mask].astype(jnp.int32)   # [E]

    # small edge tile so the demo exercises multi-step accumulation (2 grid steps)
    out = egc_layer_forward(x, feat, src, dst, params, edge_tile=32)
    out = jax.block_until_ready(out)

    ref = egc_layer_reference(x, feat, src, dst, params)
    assert out.shape == (N, H)
    # tolerance covers bf16 operands on the edge / scatter / update matmuls
    assert jnp.allclose(out, ref, rtol=5e-2, atol=5e-2), \
        f"mismatch vs reference (max abs err {float(jnp.max(jnp.abs(out - ref)))})"

    print("KERNEL_OK")
</pallas_src>

<mosaic_0001>
module attributes {stable_mosaic.version = 11 : i64} {
  func.func @egc_edge_kernel(%arg0: i32, %arg1: memref<32x128xbf16, #tpu.memory_space<vmem>>, %arg2: memref<32x1xi32, #tpu.memory_space<vmem>>, %arg3: memref<128x128xbf16, #tpu.memory_space<vmem>>, %arg4: memref<8x128xf32, #tpu.memory_space<vmem>>, %arg5: memref<8x128xf32, #tpu.memory_space<vmem>>) attributes {dimension_semantics = [#tpu.dimension_semantics<arbitrary>], iteration_bounds = array<i64: 2>, scalar_prefetch = 0 : i64, scratch_operands = 0 : i64, tpu.core_type = #tpu.core_type<tc>, window_params = [{transform_indices = @transform_0, window_bounds = array<i64: 32, 128>}, {transform_indices = @transform_1, window_bounds = array<i64: 32, 1>}, {pipeline_mode = #tpu.pipeline_mode<synchronous>, transform_indices = @transform_2, window_bounds = array<i64: 128, 128>}, {pipeline_mode = #tpu.pipeline_mode<synchronous>, transform_indices = @transform_3, window_bounds = array<i64: 8, 128>}, {pipeline_mode = #tpu.pipeline_mode<synchronous>, transform_indices = @transform_4, window_bounds = array<i64: 8, 128>}]} {
    %c0_i32 = arith.constant 0 : i32
    %0 = arith.cmpi eq, %arg0, %c0_i32 : i32
    %1 = arith.extui %0 : i1 to i32
    %c0_i32_0 = arith.constant 0 : i32
    %2 = arith.cmpi ne, %1, %c0_i32_0 : i32
    scf.if %2 {
      %cst_19 = arith.constant 0.000000e+00 : f32
      %50 = vector.broadcast %cst_19 : f32 to vector<8x128xf32>
      %c0_20 = arith.constant 0 : index
      %c0_21 = arith.constant 0 : index
      %51 = vector.load %arg5[%c0_20, %c0_21] : memref<8x128xf32, #tpu.memory_space<vmem>>, vector<8x128xf32>
      tpu.vector_store %arg5[%c0_20, %c0_21], %50 {strides = array<i32>} : memref<8x128xf32, #tpu.memory_space<vmem>>, vector<8x128xf32>,
    } else {
    }
    %c0 = arith.constant 0 : index
    %c0_1 = arith.constant 0 : index
    %3 = vector.load %arg4[%c0, %c0_1] : memref<8x128xf32, #tpu.memory_space<vmem>>, vector<1x128xf32>
    %c1 = arith.constant 1 : index
    %c0_2 = arith.constant 0 : index
    %4 = vector.load %arg4[%c1, %c0_2] : memref<8x128xf32, #tpu.memory_space<vmem>>, vector<1x128xf32>
    %c2 = arith.constant 2 : index
    %c0_3 = arith.constant 0 : index
    %5 = vector.load %arg4[%c2, %c0_3] : memref<8x128xf32, #tpu.memory_space<vmem>>, vector<1x1xf32>
    %c0_4 = arith.constant 0 : index
    %c0_5 = arith.constant 0 : index
    %6 = vector.load %arg1[%c0_4, %c0_5] : memref<32x128xbf16, #tpu.memory_space<vmem>>, vector<32x128xbf16>
    %7 = arith.extf %6 : vector<32x128xbf16> to vector<32x128xf32>
    %8 = arith.negf %7 : vector<32x128xf32>
    %9 = math.exp %8 : vector<32x128xf32>
    %cst = arith.constant 1.000000e+00 : f32
    %10 = vector.broadcast %cst : f32 to vector<32x128xf32>
    %11 = arith.addf %10, %9 : vector<32x128xf32>
    %12 = arith.divf %10, %11 : vector<32x128xf32>
    %13 = arith.mulf %7, %12 : vector<32x128xf32>
    %14 = arith.truncf %13 : vector<32x128xf32> to vector<32x128xbf16>
    %c0_6 = arith.constant 0 : index
    %c0_7 = arith.constant 0 : index
    %15 = vector.load %arg3[%c0_6, %c0_7] : memref<128x128xbf16, #tpu.memory_space<vmem>>, vector<128x128xbf16>
    %cst_8 = arith.constant dense<0.000000e+00> : vector<32x128xf32>
    %16 = tpu.matmul %14, %15, %cst_8 {dimension_numbers = #tpu.dot_dimension_numbers<[1], [0], [0], [1], [0, 0, 1, 1], [], []>} : vector<32x128xbf16>, vector<128x128xbf16>, vector<32x128xf32> -> vector<32x128xf32>
    %17 = vector.broadcast %3 : vector<1x128xf32> to vector<32x128xf32>
    %18 = arith.addf %16, %17 : vector<32x128xf32>
    %19 = arith.negf %18 : vector<32x128xf32>
    %20 = math.exp %19 : vector<32x128xf32>
    %cst_9 = arith.constant 1.000000e+00 : f32
    %21 = vector.broadcast %cst_9 : f32 to vector<32x128xf32>
    %22 = arith.addf %21, %20 : vector<32x128xf32>
    %23 = arith.divf %21, %22 : vector<32x128xf32>
    %24 = arith.mulf %18, %23 : vector<32x128xf32>
    %25 = vector.broadcast %4 : vector<1x128xf32> to vector<32x128xf32>
    %26 = arith.mulf %24, %25 : vector<32x128xf32>
    %cst_10 = arith.constant dense<0.000000e+00> : vector<32xf32>
    %27 = vector.multi_reduction <add>, %26, %cst_10 [1] : vector<32x128xf32> to vector<32xf32>
    %28 = vector.shape_cast %27 : vector<32xf32> to vector<32x1xf32>
    %29 = vector.broadcast %5 : vector<1x1xf32> to vector<32x1xf32>
    %30 = arith.addf %28, %29 : vector<32x1xf32>
    %31 = arith.negf %30 : vector<32x1xf32>
    %32 = math.exp %31 : vector<32x1xf32>
    %cst_11 = arith.constant 1.000000e+00 : f32
    %33 = vector.broadcast %cst_11 : f32 to vector<32x1xf32>
    %34 = arith.addf %33, %32 : vector<32x1xf32>
    %35 = arith.divf %33, %34 : vector<32x1xf32>
    %36 = vector.broadcast %35 : vector<32x1xf32> to vector<32x128xf32>
    %37 = arith.mulf %24, %36 : vector<32x128xf32>
    %38 = arith.truncf %37 : vector<32x128xf32> to vector<32x128xbf16>
    %c0_12 = arith.constant 0 : index
    %c0_13 = arith.constant 0 : index
    %39 = vector.load %arg2[%c0_12, %c0_13] : memref<32x1xi32, #tpu.memory_space<vmem>>, vector<32x1xi32>
    %40 = tpu.iota {dimensions = array<i32: 1>} : vector<32x8xi32>
    %41 = vector.broadcast %39 : vector<32x1xi32> to vector<32x8xi32>
    %42 = arith.cmpi eq, %41, %40 : vector<32x8xi32>
    %43 = arith.extui %42 : vector<32x8xi1> to vector<32x8xi32>
    %44 = arith.sitofp %43 : vector<32x8xi32> to vector<32x8xf32>
    %45 = arith.truncf %44 : vector<32x8xf32> to vector<32x8xbf16>
    %c0_14 = arith.constant 0 : index
    %c0_15 = arith.constant 0 : index
    %46 = vector.load %arg5[%c0_14, %c0_15] : memref<8x128xf32, #tpu.memory_space<vmem>>, vector<8x128xf32>
    %cst_16 = arith.constant dense<0.000000e+00> : vector<8x128xf32>
    %47 = tpu.matmul %45, %38, %cst_16 {dimension_numbers = #tpu.dot_dimension_numbers<[0], [0], [1], [1], [0, 1, 1, 1], [], []>} : vector<32x8xbf16>, vector<32x128xbf16>, vector<8x128xf32> -> vector<8x128xf32>
    %48 = arith.addf %46, %47 : vector<8x128xf32>
    %c0_17 = arith.constant 0 : index
    %c0_18 = arith.constant 0 : index
    %49 = vector.load %arg5[%c0_17, %c0_18] : memref<8x128xf32, #tpu.memory_space<vmem>>, vector<8x128xf32>
    tpu.vector_store %arg5[%c0_17, %c0_18], %48 {strides = array<i32>} : memref<8x128xf32, #tpu.memory_space<vmem>>, vector<8x128xf32>,
    return
  }
  func.func @transform_0(%arg0: i32) -> (i32, i32) {
    %c0_i32 = arith.constant 0 : i32
    %c0_i32_0 = arith.constant 0 : i32
    return %arg0, %c0_i32 : i32, i32
  }
  func.func @transform_1(%arg0: i32) -> (i32, i32) {
    %c0_i32 = arith.constant 0 : i32
    %c0_i32_0 = arith.constant 0 : i32
    return %arg0, %c0_i32 : i32, i32
  }
  func.func @transform_2(%arg0: i32) -> (i32, i32) {
    %c0_i32 = arith.constant 0 : i32
    %c0_i32_0 = arith.constant 0 : i32
    %c0_i32_1 = arith.constant 0 : i32
    return %c0_i32, %c0_i32_0 : i32, i32
  }
  func.func @transform_3(%arg0: i32) -> (i32, i32) {
    %c0_i32 = arith.constant 0 : i32
    %c0_i32_0 = arith.constant 0 : i32
    %c0_i32_1 = arith.constant 0 : i32
    return %c0_i32, %c0_i32_0 : i32, i32
  }
  func.func @transform_4(%arg0: i32) -> (i32, i32) {
    %c0_i32 = arith.constant 0 : i32
    %c0_i32_0 = arith.constant 0 : i32
    %c0_i32_1 = arith.constant 0 : i32
    return %c0_i32, %c0_i32_0 : i32, i32
  }
}

</mosaic_0001>

<llo_original>
// kernel: tpu_custom_call.1
$region0: #{tpu_custom_call.1}
  #allocation0 [shape = 'u32[]', space=smem, size = 0x4, offset = 0x4, fixed_abs, tag = 'smem constant byte address 0x4 - core index']
  #allocation1 [shape = 'u32[144,128]{1,0:T(1,128)}', space=vmem, size = 0x12000, scoped, tag = 'internal scratch']
  %s0 = inlined_call_operand.hbm [shape: bf16[64,128], index: 0, kind: input, shape index: {}]
  %s1 = inlined_call_operand.vmem [shape: s32[64,1], index: 1, kind: input, shape index: {}]
  %s2 = inlined_call_operand.vmem [shape: bf16[128,128], index: 2, kind: input, shape index: {}]
  %s3 = inlined_call_operand.vmem [shape: f32[8,128], index: 3, kind: input, shape index: {}]
  %s4 = inlined_call_operand.hbm [shape: f32[8,128], index: 4, kind: output, shape index: {}]
  %s5 = sld [smem:[#allocation0]]
  $region57: #{tpu_custom_call.1} parent=0
    _
  %s7 = ssub.s32 1, %s5
  %s8 = scalar_select 0, %s7, %s5
  $region1: #{tpu_custom_call.1} parent=0
    #allocation2 [shape = 'u8[16384]{0}', space=vmem, size = 0x4000, scoped, tag = 'input window, operand 0']
    #allocation3 [shape = 's32[2]{0}', space=sflag, size = 0x8, scoped, tag = 'scoped memory for tpu_custom_call.1']
    #allocation4 [shape = 's32[2]{0}', space=sflag, size = 0x8, scoped, tag = 'scoped memory for tpu_custom_call.1']
    #allocation5 [shape = 'u8[4096]{0}', space=vmem, size = 0x1000, scoped, tag = 'output window, operand 0, single buffered']
    %9 = vsyncpa [#allocation3], 0
    %s10 = scalar_lea.sflag [#allocation3], 1
    %11 = vsyncpa %s10, 0
    %12 = vsyncpa [#allocation4], 0
    loop: start=0, step=1, limit=4
    $region2: #{tpu_custom_call.1} parent=1 // loop_pre_header
      _
    $region3: #{tpu_custom_call.1} parent=1 // loop_header
      %s14 = sphi 0, %s18
      %p15 = scmp.ge.s32.totalorder %s14, 4
      %s24 = sphi 0, %s26
      %s27 = sphi 0, %s24
      %s28 = sphi 0, %s27
      %s44 = sphi 0, %s28
      %s50 = sphi 0, %s52
      %s53 = sphi 0, %s50
      %s54 = sphi 0, %s53
      %s70 = sphi 0, %s54
      %s74 = sphi 0, %s74
      %s76 = sphi 0, %s74
      %s77 = sphi 0, %s76
      %s91 = sphi 0, %s77
      %s95 = sphi 0, %s95
      %s97 = sphi 0, %s95
      %s98 = sphi 0, %s97
      %s112 = sphi 0, %s98
      %s116 = sphi 0, %s116
      %s118 = sphi 0, %s116
      %s119 = sphi 0, %s118
      %s133 = sphi 0, %s119
    $region4: #{tpu_custom_call.1} parent=1 // loop_header_branch
      %17 = sbr.rel (%p15) target = $region8
    $region5: #{tpu_custom_call.1} parent=1 // loop_body
      %s19 = ssub.s32 %s14, 1
      %s20 = ssub.s32 %s14, 2
      %s21 = sadd.s32 %s14, 1
      %s22 = ssub.s32 %s14, %s21
      %p23 = scmp.eq.s32.totalorder %s22, 0
      %s25 = sadd.s32 %s24, 1
      %s26 = scalar_select %p23, %s24, %s25
      %p29 = pneg %p23
      %p30 = scmp.eq.s32.totalorder %s14, 1
      %p31 = por %p29, %p30
      %p32 = scmp.ne.s32.totalorder %s24, %s27
      %p33 = scmp.eq.s32.totalorder %s14, 0
      %p34 = por %p32, %p33
      %p35 = scmp.ne.s32.totalorder %s24, %s27
      %p36 = scmp.eq.s32.totalorder %s19, 1
      %p37 = por %p35, %p36
      %p38 = scmp.ne.s32.totalorder %s27, %s28
      %p39 = scmp.eq.s32.totalorder %s19, 0
      %p40 = por %p38, %p39
      %p41 = scmp.ne.s32.totalorder %s27, %s28
      %p42 = scmp.eq.s32.totalorder %s20, 1
      %p43 = por %p41, %p42
      %p45 = scmp.ne.s32.totalorder %s28, %s44
      %p46 = scmp.eq.s32.totalorder %s20, 0
      %p47 = por %p45, %p46
      %s48 = ssub.s32 %s14, %s21
      %p49 = scmp.eq.s32.totalorder %s48, 0
      %s51 = sadd.s32 %s50, 1
      %s52 = scalar_select %p49, %s50, %s51
      %p55 = pneg %p49
      %p56 = scmp.eq.s32.totalorder %s14, 1
      %p57 = por %p55, %p56
      %p58 = scmp.ne.s32.totalorder %s50, %s53
      %p59 = scmp.eq.s32.totalorder %s14, 0
      %p60 = por %p58, %p59
      %p61 = scmp.ne.s32.totalorder %s50, %s53
      %p62 = scmp.eq.s32.totalorder %s19, 1
      %p63 = por %p61, %p62
      %p64 = scmp.ne.s32.totalorder %s53, %s54
      %p65 = scmp.eq.s32.totalorder %s19, 0
      %p66 = por %p64, %p65
      %p67 = scmp.ne.s32.totalorder %s53, %s54
      %p68 = scmp.eq.s32.totalorder %s20, 1
      %p69 = por %p67, %p68
      %p71 = scmp.ne.s32.totalorder %s54, %s70
      %p72 = scmp.eq.s32.totalorder %s20, 0
      %p73 = por %p71, %p72
      %s75 = sadd.s32 %s74, 1
      %p78 = scmp.eq.s32.totalorder %s14, 1
      %p79 = scmp.ne.s32.totalorder %s74, %s76
      %p80 = scmp.eq.s32.totalorder %s14, 0
      %p81 = por %p79, %p80
      %p82 = scmp.ne.s32.totalorder %s74, %s76
      %p83 = scmp.eq.s32.totalorder %s19, 1
      %p84 = por %p82, %p83
      %p85 = scmp.ne.s32.totalorder %s76, %s77
      %p86 = scmp.eq.s32.totalorder %s19, 0
      %p87 = por %p85, %p86
      %p88 = scmp.ne.s32.totalorder %s76, %s77
      %p89 = scmp.eq.s32.totalorder %s20, 1
      %p90 = por %p88, %p89
      %p92 = scmp.ne.s32.totalorder %s77, %s91
      %p93 = scmp.eq.s32.totalorder %s20, 0
      %p94 = por %p92, %p93
      %s96 = sadd.s32 %s95, 1
      %p99 = scmp.eq.s32.totalorder %s14, 1
      %p100 = scmp.ne.s32.totalorder %s95, %s97
      %p101 = scmp.eq.s32.totalorder %s14, 0
      %p102 = por %p100, %p101
      %p103 = scmp.ne.s32.totalorder %s95, %s97
      %p104 = scmp.eq.s32.totalorder %s19, 1
      %p105 = por %p103, %p104
      %p106 = scmp.ne.s32.totalorder %s97, %s98
      %p107 = scmp.eq.s32.totalorder %s19, 0
      %p108 = por %p106, %p107
      %p109 = scmp.ne.s32.totalorder %s97, %s98
      %p110 = scmp.eq.s32.totalorder %s20, 1
      %p111 = por %p109, %p110
      %p113 = scmp.ne.s32.totalorder %s98, %s112
      %p114 = scmp.eq.s32.totalorder %s20, 0
      %p115 = por %p113, %p114
      %s117 = sadd.s32 %s116, 1
      %p120 = scmp.eq.s32.totalorder %s14, 1
      %p121 = scmp.ne.s32.totalorder %s116, %s118
      %p122 = scmp.eq.s32.totalorder %s14, 0
      %p123 = por %p121, %p122
      %p124 = scmp.ne.s32.totalorder %s116, %s118
      %p125 = scmp.eq.s32.totalorder %s19, 1
      %p126 = por %p124, %p125
      %p127 = scmp.ne.s32.totalorder %s118, %s119
      %p128 = scmp.eq.s32.totalorder %s19, 0
      %p129 = por %p127, %p128
      %p130 = scmp.ne.s32.totalorder %s118, %s119
      %p131 = scmp.eq.s32.totalorder %s20, 1
      %p132 = por %p130, %p131
      %p134 = scmp.ne.s32.totalorder %s119, %s133
      %p135 = scmp.eq.s32.totalorder %s20, 0
      %p136 = por %p134, %p135
      %p137 = scmp.le.s32.totalorder 1, %s14
      %p138 = scmp.lt.s32.totalorder %s14, 3
      %p139 = pnand %p137, %p138
      %p140 = pneg %p139
      // Predicated region
      $region9: #{tpu_custom_call.1} parent=5 // pred_check
        _
      $region10: #{tpu_custom_call.1} parent=5 // pred_check_branch
        %142 = sbr.rel (%p139) target = $region12
      $region11: #{tpu_custom_call.1} parent=5 // pred_region
        %s143 = ssub.s32 %s14, 1
        // Predicated region
        $region13: #{tpu_custom_call.1} parent=11 // pred_check
          %p144 = pneg %p87
        $region14: #{tpu_custom_call.1} parent=11 // pred_check_branch
          %146 = sbr.rel (%p144) target = $region16
        $region15: #{tpu_custom_call.1} parent=11 // pred_region
          _
        $region16: #{tpu_custom_call.1} parent=11 // pred_fallthru
          _
        // Predicated region
        $region17: #{tpu_custom_call.1} parent=11 // pred_check
          %p147 = pneg %p108
        $region18: #{tpu_custom_call.1} parent=11 // pred_check_branch
          %149 = sbr.rel (%p147) target = $region20
        $region19: #{tpu_custom_call.1} parent=11 // pred_region
          _
        $region20: #{tpu_custom_call.1} parent=11 // pred_fallthru
          _
      $region12: #{tpu_custom_call.1} parent=5 // pred_fallthru
        _
      %p150 = scmp.lt.s32.totalorder %s14, 2
      // Predicated region
      $region21: #{tpu_custom_call.1} parent=5 // pred_check
        %p151 = pneg %p150
      $region22: #{tpu_custom_call.1} parent=5 // pred_check_branch
        %153 = sbr.rel (%p151) target = $region24
      $region23: #{tpu_custom_call.1} parent=5 // pred_region
        // Predicated region
        $region25: #{tpu_custom_call.1} parent=23 // pred_check
          %p154 = pneg %p34
        $region26: #{tpu_custom_call.1} parent=23 // pred_check_branch
          %156 = sbr.rel (%p154) target = $region28
        $region27: #{tpu_custom_call.1} parent=23 // pred_region
          %s157 = sand.u32 %s24, 1
          %s158 = scalar_lea.sflag [#allocation3], %s157
          %s159 = sand.u32 %s24, 1
          %s160 = smul.addr %s159, 16
          %s161 = scalar_lea.vmem [#allocation2], %s160
          %s162 = smul.u32 4, %s14
          %s164 = ssub.s32 256, 256
          %165 = vsyncadd %s158, %s164
          %s166 = smul.addr %s162, 64
          %s167 = scalar_lea.hbm %s0, %s166
          %s168 = sshll.u32 %s161, 4
          %s169 = int_to_ptr.vmem [resolvable:$true] %s168
          %174 = dma.hbm_to_vmem [thread:$0]  %s167, 256, %s169, %s158, 64, 64, 4
        $region28: #{tpu_custom_call.1} parent=23 // pred_fallthru
          _
        // Predicated region
        $region29: #{tpu_custom_call.1} parent=23 // pred_check
          %p175 = pneg %p60
        $region30: #{tpu_custom_call.1} parent=23 // pred_check_branch
          %177 = sbr.rel (%p175) target = $region32
        $region31: #{tpu_custom_call.1} parent=23 // pred_region
          %s178 = smul.u32 4, %s14
          %p179 = scmp.lt.s32.totalorder %s178, 7
          %s180 = scalar_select %p179, %s178, 7
          %s181 = smul.addr %s180, 8
          %s182 = scalar_lea.vmem %s1, %s181
          %s183 = smul.u32 4, %s14
        $region32: #{tpu_custom_call.1} parent=23 // pred_fallthru
          _
      $region24: #{tpu_custom_call.1} parent=5 // pred_fallthru
        _
      %p184 = scmp.le.s32.totalorder 1, %s14
      %p185 = scmp.lt.s32.totalorder %s14, 3
      %p186 = pnand %p184, %p185
      %p187 = pneg %p186
      // Predicated region
      $region33: #{tpu_custom_call.1} parent=5 // pred_check
        _
      $region34: #{tpu_custom_call.1} parent=5 // pred_check_branch
        %189 = sbr.rel (%p186) target = $region36
      $region35: #{tpu_custom_call.1} parent=5 // pred_region
        %s190 = ssub.s32 %s14, 1
        %s191 = sand.u32 %s27, 1
        %s192 = scalar_lea.sflag [#allocation3], %s191
        %s193 = sand.u32 %s27, 1
        %s194 = smul.addr %s193, 16
        %s195 = scalar_lea.vmem [#allocation2], %s194
        // Predicated region
        $region37: #{tpu_custom_call.1} parent=35 // pred_check
          %p196 = pneg %p40
        $region38: #{tpu_custom_call.1} parent=35 // pred_check_branch
          %198 = sbr.rel (%p196) target = $region40
        $region39: #{tpu_custom_call.1} parent=35 // pred_region
          %199 = dma.done %s192, 256
        $region40: #{tpu_custom_call.1} parent=35 // pred_fallthru
          _
        %s200 = sand.u32 %s27, 1
        %s201 = scalar_lea.sflag [#allocation3], %s200
        %s202 = sand.u32 %s27, 1
        %s203 = smul.addr %s202, 16
        %s204 = scalar_lea.vmem [#allocation2], %s203
        %p205 = pneg %p40
        %p206 = pneg %p37
        %s207 = smul.u32 4, %s19
        %p208 = scmp.lt.s32.totalorder %s207, 7
        %s209 = scalar_select %p208, %s207, 7
        %s210 = smul.addr %s209, 8
        %s211 = scalar_lea.vmem %s1, %s210
        %p212 = pneg %p66
        %p213 = pneg %p63
        %p214 = pneg %p87
        %p215 = pneg %p84
        %p216 = pneg %p108
        %p217 = pneg %p105
        %p218 = pneg %p129
        %p219 = pneg %p126
        %s220 = smul.u32 4, %s19
        %s221 = smul.u32 4, %s19
        %p222 = scmp.lt.s32.totalorder %s221, 7
        %s223 = scalar_select %p222, %s221, 7
        %s224 = smul.addr %s223, 8
        %s225 = scalar_lea.vmem %s1, %s224
        %s226 = smul.u32 4, %s19
        %p228 = scmp.eq.s32.totalorder %s19, 0
        // Predicated region
        $region41: #{tpu_custom_call.1} parent=35 // pred_check
          %p229 = pneg %p228
        $region42: #{tpu_custom_call.1} parent=35 // pred_check_branch
          %231 = sbr.rel (%p229) target = $region44
        $region43: #{tpu_custom_call.1} parent=35 // pred_region
          %232 = vst [vmem:[#allocation5] sm:$0xff] 0.0
        $region44: #{tpu_custom_call.1} parent=35 // pred_fallthru
          _
        %v233 = vld [vmem:[%s3] sm:$0x1]
        %v234 = vld [vmem:[%s3 + $0x1] sm:$0x1]
        %v235 = vld [vmem:[%s3 + $0x2] sm:$0x1]
        %v236 = vld [vmem:[%s195] sm:$0xf]
        %v237 = vld [vmem:[%s195 + $0x4] sm:$0xf]
        %v238 = vld [vmem:[%s195 + $0x8] sm:$0xf]
        %v239 = vld [vmem:[%s195 + $0xc] sm:$0xf]
        %v240 = vunpack.c.l.bf16 %v236
        %v241 = vunpack.c.l.bf16 %v237
        %v242 = vunpack.c.l.bf16 %v238
        %v243 = vunpack.c.l.bf16 %v239
        %v244 = vxor.u32 %v240, 2147483648
        %v245 = vxor.u32 %v241, 2147483648
        %v246 = vxor.u32 %v242, 2147483648
        %v247 = vxor.u32 %v243, 2147483648
        %v248 = vmul.f32 %v244, 1.442695
        %v249 = vpow.pop %v248
        %v250 = vmul.f32 %v245, 1.442695
        %v251 = vpow.pop %v250
        %v252 = vmul.f32 %v246, 1.442695
        %v253 = vpow.pop %v252
        %v254 = vmul.f32 %v247, 1.442695
        %v255 = vpow.pop %v254
        %v256 = vadd.f32 %v249, 1.0
        %v257 = vadd.f32 %v251, 1.0
        %v258 = vadd.f32 %v253, 1.0
        %v259 = vadd.f32 %v255, 1.0
        %v260 = vrcp.pop %v256
        %v261 = vmul.f32 1.0, %v260
        %v262 = vrcp.pop %v257
        %v263 = vmul.f32 1.0, %v262
        %v264 = vrcp.pop %v258
        %v265 = vmul.f32 1.0, %v264
        %v266 = vrcp.pop %v259
        %v267 = vmul.f32 1.0, %v266
        %v268 = vmul.f32 %v240, %v261
        %v269 = vmul.f32 %v241, %v263
        %v270 = vmul.f32 %v242, %v265
        %v271 = vmul.f32 %v243, %v267
        %v272 = vpack.c.bf16 %v269, %v268
        %v273 = vpack.c.bf16 %v271, %v270
        %v274 = vld [vmem:[%s2] sm:$0xf]
        %v275 = vld [vmem:[%s2 + $0x4] sm:$0xf]
        %v276 = vld [vmem:[%s2 + $0x8] sm:$0xf]
        %v277 = vld [vmem:[%s2 + $0xc] sm:$0xf]
        %v278 = vld [vmem:[%s2 + $0x10] sm:$0xf]
        %v279 = vld [vmem:[%s2 + $0x14] sm:$0xf]
        %v280 = vld [vmem:[%s2 + $0x18] sm:$0xf]
        %v281 = vld [vmem:[%s2 + $0x1c] sm:$0xf]
        %v282 = vld [vmem:[%s2 + $0x20] sm:$0xf]
        %v283 = vld [vmem:[%s2 + $0x24] sm:$0xf]
        %v284 = vld [vmem:[%s2 + $0x28] sm:$0xf]
        %v285 = vld [vmem:[%s2 + $0x2c] sm:$0xf]
        %v286 = vld [vmem:[%s2 + $0x30] sm:$0xf]
        %v287 = vld [vmem:[%s2 + $0x34] sm:$0xf]
        %v288 = vld [vmem:[%s2 + $0x38] sm:$0xf]
        %v289 = vld [vmem:[%s2 + $0x3c] sm:$0xf]
        %v290 = vlaneseq
        %v291 = vshrl.u32 %v290, 7
        %v292 = vsub.s32 0, %v291
        %v293 = vrot.slane %v233, %v292
        %v310 = vunpack.c.l.b16 %v274
        %v311 = vunpack.c.l.b16 %v275
        %v312 = vunpack.c.l.b16 %v276
        %v313 = vunpack.c.l.b16 %v277
        %v314 = vunpack.c.l.b16 %v278
        %v315 = vunpack.c.l.b16 %v279
        %v316 = vunpack.c.l.b16 %v280
        %v317 = vunpack.c.l.b16 %v281
        %v318 = vunpack.c.l.b16 %v282
        %v319 = vunpack.c.l.b16 %v283
        %v320 = vunpack.c.l.b16 %v284
        %v321 = vunpack.c.l.b16 %v285
        %v322 = vunpack.c.l.b16 %v286
        %v323 = vunpack.c.l.b16 %v287
        %v324 = vunpack.c.l.b16 %v288
        %v325 = vunpack.c.l.b16 %v289
        %v326 = vpack.c.b16 %v311, %v310
        %v327 = vpack.c.b16 %v313, %v312
        %v328 = vpack.c.b16 %v315, %v314
        %v329 = vpack.c.b16 %v317, %v316
        %v330 = vpack.c.b16 %v319, %v318
        %v331 = vpack.c.b16 %v321, %v320
        %v332 = vpack.c.b16 %v323, %v322
        %v333 = vpack.c.b16 %v325, %v324
        %342 = vmatprep.subr.bf16.mxu0 0
        %343 = vmatpush1.bf16.msra.mxu0 %v326
        %344 = vmatprep.subr.bf16.mxu0 0
        %345 = vmatpush1.bf16.msra.mxu0 %v327
        %346 = vmatprep.subr.bf16.mxu0 0
        %347 = vmatpush1.bf16.msra.mxu0 %v328
        %348 = vmatprep.subr.bf16.mxu0 0
        %349 = vmatpush1.bf16.msra.mxu0 %v329
        %350 = vmatprep.subr.bf16.mxu0 0
        %351 = vmatpush1.bf16.msra.mxu0 %v330
        %352 = vmatprep.subr.bf16.mxu0 0
        %353 = vmatpush1.bf16.msra.mxu0 %v331
        %354 = vmatprep.subr.bf16.mxu0 0
        %355 = vmatpush1.bf16.msra.mxu0 %v332
        %356 = vmatprep.subr.bf16.mxu0 0
        %357 = vmatpush1.bf16.msra.mxu0 %v333
        %358 = vmatprep.subr.bf16.mxu0 0
        %359 = vmatpush1.bf16.msra.mxu0 0
        %360 = vmatprep.subr.bf16.mxu0 0
        %361 = vmatpush1.bf16.msra.mxu0 0
        %362 = vmatprep.subr.bf16.mxu0 0
        %363 = vmatpush1.bf16.msra.mxu0 0
        %364 = vmatprep.subr.bf16.mxu0 0
        %365 = vmatpush1.bf16.msra.mxu0 0
        %366 = vmatprep.subr.bf16.mxu0 0
        %367 = vmatpush1.bf16.msra.mxu0 0
        %368 = vmatprep.subr.bf16.mxu0 0
        %369 = vmatpush1.bf16.msra.mxu0 0
        %370 = vmatprep.subr.bf16.mxu0 0
        %371 = vmatpush1.bf16.msra.mxu0 0
        %372 = vmatprep.subr.bf16.mxu0 0
        %373 = vmatpush1.bf16.msra.mxu0 0
        %374 = vmatprep.mubr.bf16.mxu0 0
        %375 = vmatmul.mubr.bf16.gmra.mrb[0].mxu0 %v272
        %v376 = vpop.f32.mrb[0].mxu0
        %v377 = vadd.f32 %v293, %v376
        %v378 = vpop.f32.mrb[0].mxu0
        %v379 = vpop.f32.mrb[0].mxu0
        %v380 = vadd.f32 %v293, %v379
        %v381 = vpop.f32.mrb[0].mxu0
        %382 = vmatprep.mubr.bf16.mxu0 0
        %383 = vmatmul.mubr.bf16.gmra.mrb[0].mxu0 %v273
        %v384 = vpop.f32.mrb[0].mxu0
        %v385 = vadd.f32 %v293, %v384
        %v386 = vpop.f32.mrb[0].mxu0
        %v387 = vpop.f32.mrb[0].mxu0
        %v388 = vadd.f32 %v293, %v387
        %v389 = vpop.f32.mrb[0].mxu0
        %390 = vdwg.mxu0
        %v391 = vxor.u32 %v377, 2147483648
        %v392 = vxor.u32 %v380, 2147483648
        %v393 = vxor.u32 %v385, 2147483648
        %v394 = vxor.u32 %v388, 2147483648
        %v395 = vmul.f32 %v391, 1.442695
        %v396 = vpow.pop %v395
        %v397 = vmul.f32 %v392, 1.442695
        %v398 = vpow.pop %v397
        %v399 = vmul.f32 %v393, 1.442695
        %v400 = vpow.pop %v399
        %v401 = vmul.f32 %v394, 1.442695
        %v402 = vpow.pop %v401
        %v403 = vadd.f32 %v396, 1.0
        %v404 = vadd.f32 %v398, 1.0
        %v405 = vadd.f32 %v400, 1.0
        %v406 = vadd.f32 %v402, 1.0
        %v407 = vrcp.pop %v403
        %v408 = vmul.f32 1.0, %v407
        %v409 = vrcp.pop %v404
        %v410 = vmul.f32 1.0, %v409
        %v411 = vrcp.pop %v405
        %v412 = vmul.f32 1.0, %v411
        %v413 = vrcp.pop %v406
        %v414 = vmul.f32 1.0, %v413
        %v415 = vmul.f32 %v377, %v408
        %v416 = vmul.f32 %v380, %v410
        %v417 = vmul.f32 %v385, %v412
        %v418 = vmul.f32 %v388, %v414
        %v419 = vlaneseq
        %v420 = vshrl.u32 %v419, 7
        %v421 = vsub.s32 0, %v420
        %v422 = vrot.slane %v234, %v421
        %v423 = vmul.f32 %v415, %v422
        %v424 = vmul.f32 %v416, %v422
        %v425 = vmul.f32 %v417, %v422
        %v426 = vmul.f32 %v418, %v422
        %427 = vadd.xlane.f32.xlu0 %v423
        %v428 = vpop.xlane.xlu0 %427
        %429 = vadd.xlane.f32.xlu0 %v424
        %v430 = vpop.xlane.xlu0 %429
        %431 = vadd.xlane.f32.xlu0 %v425
        %v432 = vpop.xlane.xlu0 %431
        %433 = vadd.xlane.f32.xlu0 %v426
        %v434 = vpop.xlane.xlu0 %433
        %v435 = vlaneseq
        %v436 = vshrl.u32 %v435, 7
        %v437 = vsub.s32 0, %v436
        %v438 = vrot.slane %v235, %v437
        %v439 = vadd.f32 %v428, %v438
        %v440 = vadd.f32 %v430, %v438
        %v441 = vadd.f32 %v432, %v438
        %v442 = vadd.f32 %v434, %v438
        %v443 = vxor.u32 %v439, 2147483648
        %v444 = vxor.u32 %v440, 2147483648
        %v445 = vxor.u32 %v441, 2147483648
        %v446 = vxor.u32 %v442, 2147483648
        %v447 = vmul.f32 %v443, 1.442695
        %v448 = vpow.pop %v447
        %v449 = vmul.f32 %v444, 1.442695
        %v450 = vpow.pop %v449
        %v451 = vmul.f32 %v445, 1.442695
        %v452 = vpow.pop %v451
        %v453 = vmul.f32 %v446, 1.442695
        %v454 = vpow.pop %v453
        %v455 = vadd.f32 %v448, 1.0
        %v456 = vadd.f32 %v450, 1.0
        %v457 = vadd.f32 %v452, 1.0
        %v458 = vadd.f32 %v454, 1.0
        %v459 = vrcp.pop %v455
        %v460 = vmul.f32 1.0, %v459
        %v461 = vrcp.pop %v456
        %v462 = vmul.f32 1.0, %v461
        %v463 = vrcp.pop %v457
        %v464 = vmul.f32 1.0, %v463
        %v465 = vrcp.pop %v458
        %v466 = vmul.f32 1.0, %v465
        %468 = vset.pattern.permute.xlu0 0
        %469 = vperm.xlu0 %468, %v460
        %v470 = vpop.permute.xlu0 %469
        %473 = vset.pattern.permute.xlu0 0
        %474 = vperm.xlu0 %473, %v462
        %v475 = vpop.permute.xlu0 %474
        %478 = vset.pattern.permute.xlu0 0
        %479 = vperm.xlu0 %478, %v464
        %v480 = vpop.permute.xlu0 %479
        %483 = vset.pattern.permute.xlu0 0
        %484 = vperm.xlu0 %483, %v466
        %v485 = vpop.permute.xlu0 %484
        %v487 = vmul.f32 %v415, %v470
        %v488 = vmul.f32 %v416, %v475
        %v489 = vmul.f32 %v417, %v480
        %v490 = vmul.f32 %v418, %v485
        %v491 = vpack.c.bf16 %v488, %v487
        %v492 = vpack.c.bf16 %v490, %v489
        %v493 = vld [vmem:[%s225] sm:$0xff]
        %v494 = vld [vmem:[%s225 + $0x8] sm:$0xff]
        %v495 = vld [vmem:[%s225 + $0x10] sm:$0xff]
        %v496 = vld [vmem:[%s225 + $0x18] sm:$0xff]
        %v497 = vlaneseq
        %v498 = vand.u32 %v497, 127
        %499 = vset.pattern.permute.xlu0 0
        %500 = vperm.xlu0 %499, %v493
        %v501 = vpop.permute.xlu0 %500
        %502 = vset.pattern.permute.xlu0 0
        %503 = vperm.xlu0 %502, %v494
        %v504 = vpop.permute.xlu0 %503
        %505 = vset.pattern.permute.xlu0 0
        %506 = vperm.xlu0 %505, %v495
        %v507 = vpop.permute.xlu0 %506
        %508 = vset.pattern.permute.xlu0 0
        %509 = vperm.xlu0 %508, %v496
        %v510 = vpop.permute.xlu0 %509
        %vm511 = vcmp.eq.s32.totalorder %v501, %v498
        %vm512 = vcmp.eq.s32.totalorder %v504, %v498
        %vm513 = vcmp.eq.s32.totalorder %v507, %v498
        %vm514 = vcmp.eq.s32.totalorder %v510, %v498
        %v515 = vsel %vm511, 1, 0
        %v516 = vsel %vm512, 1, 0
        %v517 = vsel %vm513, 1, 0
        %v518 = vsel %vm514, 1, 0
        %v519 = vcvt.s32.f32 %v515
        %v520 = vcvt.s32.f32 %v516
        %v521 = vcvt.s32.f32 %v517
        %v522 = vcvt.s32.f32 %v518
        %v523 = vpack.c.bf16 %v520, %v519
        %v524 = vpack.c.bf16 %v522, %v521
        %v525 = vld [vmem:[#allocation5] sm:$0xff]
        %526 = vxpose.xlu0.c.b16.start [1/8] %v523, 128
        %527 = vxpose.xlu0.c.b16.cont [2/8] %v524, 128
        %528 = vxpose.xlu0.c.b16.cont [3/8] 0, 128
        %529 = vxpose.xlu0.c.b16.cont [4/8] 0, 128
        %530 = vxpose.xlu0.c.b16.cont [5/8] 0, 128
        %531 = vxpose.xlu0.c.b16.cont [6/8] 0, 128
        %532 = vxpose.xlu0.c.b16.cont [7/8] 0, 128
        %533 = vxpose.xlu0.c.b16.end [8/8] 0, 128
        %v534 = vpop.trf.xlu0
        %v535 = vpop.trf.xlu0
        %v536 = vpop.trf.xlu0
        %v537 = vpop.trf.xlu0
        %v538 = vpop.trf.xlu0
        %v539 = vpop.trf.xlu0
        %v540 = vpop.trf.xlu0
        %v541 = vpop.trf.xlu0
        %vm542 = vcmask 261120
        %v544 = vsel %vm542, %v534, 0
        %546 = vmatprep.subr.bf16.mxu0 0
        %547 = vmatpush1.bf16.msra.mxu0 %v491
        %548 = vmatprep.subr.bf16.mxu0 0
        %549 = vmatpush1.bf16.msra.mxu0 %v492
        %550 = vmatprep.subr.bf16.mxu0 0
        %551 = vmatpush1.bf16.msra.mxu0 0
        %552 = vmatprep.subr.bf16.mxu0 0
        %553 = vmatpush1.bf16.msra.mxu0 0
        %554 = vmatprep.subr.bf16.mxu0 0
        %555 = vmatpush1.bf16.msra.mxu0 0
        %556 = vmatprep.subr.bf16.mxu0 0
        %557 = vmatpush1.bf16.msra.mxu0 0
        %558 = vmatprep.subr.bf16.mxu0 0
        %559 = vmatpush1.bf16.msra.mxu0 0
        %560 = vmatprep.subr.bf16.mxu0 0
        %561 = vmatpush1.bf16.msra.mxu0 0
        %562 = vmatprep.subr.bf16.mxu0 0
        %563 = vmatpush1.bf16.msra.mxu0 0
        %564 = vmatprep.subr.bf16.mxu0 0
        %565 = vmatpush1.bf16.msra.mxu0 0
        %566 = vmatprep.subr.bf16.mxu0 0
        %567 = vmatpush1.bf16.msra.mxu0 0
        %568 = vmatprep.subr.bf16.mxu0 0
        %569 = vmatpush1.bf16.msra.mxu0 0
        %570 = vmatprep.subr.bf16.mxu0 0
        %571 = vmatpush1.bf16.msra.mxu0 0
        %572 = vmatprep.subr.bf16.mxu0 0
        %573 = vmatpush1.bf16.msra.mxu0 0
        %574 = vmatprep.subr.bf16.mxu0 0
        %575 = vmatpush1.bf16.msra.mxu0 0
        %576 = vmatprep.subr.bf16.mxu0 0
        %577 = vmatpush1.bf16.msra.mxu0 0
        %578 = vmatprep.mubr.bf16.mxu0 0
        %579 = vmatmul.mubr.bf16.gmra.mrb[0].mxu0 %v544
        %v580 = vpop.f32.mrb[0].mxu0
        %v581 = vadd.f32 0.0, %v580
        %v582 = vpop.f32.mrb[0].mxu0
        %v583 = vpop.f32.mrb[0].mxu0
        %v584 = vpop.f32.mrb[0].mxu0
        %585 = vdwg.mxu0
        %v586 = vadd.f32 %v525, %v581
        %587 = vst [vmem:[#allocation5] sm:$0xff] %v586
        // Predicated region
        $region45: #{tpu_custom_call.1} parent=35 // pred_check
          %p588 = pneg %p126
        $region46: #{tpu_custom_call.1} parent=35 // pred_check_branch
          %590 = sbr.rel (%p588) target = $region48
        $region47: #{tpu_custom_call.1} parent=35 // pred_region
          %s592 = ssub.s32 128, 128
          %593 = vsyncadd [#allocation4], %s592
          %s595 = sshll.u32 [#allocation5], 4
          %s596 = int_to_ptr.vmem [resolvable:$true] %s595
          %598 = dma.vmem_to_hbm [thread:$0]  %s596, 128, %s4, [#allocation4]
        $region48: #{tpu_custom_call.1} parent=35 // pred_fallthru
          _
        // Predicated region
        $region49: #{tpu_custom_call.1} parent=35 // pred_check
          %p599 = pneg %p126
        $region50: #{tpu_custom_call.1} parent=35 // pred_check_branch
          %601 = sbr.rel (%p599) target = $region52
        $region51: #{tpu_custom_call.1} parent=35 // pred_region
          %602 = dma.done [#allocation4], 128
        $region52: #{tpu_custom_call.1} parent=35 // pred_fallthru
          _
      $region36: #{tpu_custom_call.1} parent=5 // pred_fallthru
        _
      %p603 = scmp.le.s32.totalorder 2, %s14
      // Predicated region
      $region53: #{tpu_custom_call.1} parent=5 // pred_check
        %p604 = pneg %p603
      $region54: #{tpu_custom_call.1} parent=5 // pred_check_branch
        %606 = sbr.rel (%p604) target = $region56
      $region55: #{tpu_custom_call.1} parent=5 // pred_region
        %s607 = ssub.s32 %s14, 2
      $region56: #{tpu_custom_call.1} parent=5 // pred_fallthru
        _
    $region6: #{tpu_custom_call.1} parent=1 // loop_footer
      %s18 = sadd.s32 1, %s14
    $region7: #{tpu_custom_call.1} parent=1 // loop_footer_branch
      %13 = sbr.rel target = $region3
    $region8: #{tpu_custom_call.1} parent=1 // loop_exit
      _
    %608 = vsyncpa [#allocation3], 1
    %s609 = scalar_lea.sflag [#allocation3], 1
    %610 = vsyncpa %s609, 1
    %611 = vsyncpa [#allocation4], 1
    %s612 = scalar_lea.sflag [#allocation4], 1
    %613 = vsyncpa %s612, 1

</llo_original>
